<compile_context>
chip_gen: v7x
topology: tpu7x:2x2x1
jax: 0.10.0
libtpu: 0.0.40
codegen_flags: <defaults>
</compile_context>

<pallas_src>
import functools

import jax
import jax.numpy as jnp
from jax import lax
from jax.experimental import pallas as pl
from jax.experimental.pallas import tpu as pltpu

LANES = 128          # vreg lane width
ACC_ROWS = 32        # persistent accumulator rows (4 vregs, lane-dense)
MAX_TILE_R = 4096    # DMA tile rows: (4096, 128) f32 = 2 MiB per buffer
MAX_CHUNK_R = 1024   # compute-chunk rows inside a tile (bounds VMEM temps)


def _int_pow(x, n):
    """x ** n for a small static non-negative integer n (pure VPU multiplies)."""
    result = None
    base = x
    while n:
        if n & 1:
            result = base if result is None else result * base
        n >>= 1
        if n:
            base = base * base
    return jnp.ones_like(x) if result is None else result


def _focal_elementwise(x, t, gamma, gamma_int, binary_targets):
    """Per-element focal loss (f32 in / f32 out), algebraically identical to
    the PyTorch module:
        bce  = max(x,0) - x*t + log1p(exp(-|x|))        (BCE with logits)
        mod  = exp(gamma * logsigmoid(-x*(2t-1)))  ==  sigmoid(z) ** gamma
        loss = mod * bce
    EUP budget per element: integer gamma + soft targets: exp, log1p, exp, div
                            integer gamma + binary targets: exp, log1p, div
                            non-integer gamma fallback: 5 (original form).
    """
    e_x = jnp.exp(-jnp.abs(x))
    bce = jnp.maximum(x, 0.0) - x * t + jnp.log1p(e_x)
    z = -x * (t * 2.0 - 1.0)
    # |z| == |x| exactly when t in {0, 1}: reuse e_x and skip one exp.
    e_z = e_x if binary_targets else jnp.exp(-jnp.abs(z))
    if gamma_int is not None:
        # sigmoid(z) = where(z >= 0, 1, e_z) / (1 + e_z)   (stable, exact)
        sig = jnp.where(z >= 0.0, 1.0, e_z) / (1.0 + e_z)
        mod = _int_pow(sig, gamma_int)
    else:
        invprobs = jnp.minimum(z, 0.0) - jnp.log1p(e_z)   # logsigmoid(z)
        mod = jnp.exp(invprobs * gamma)
    return mod * bce


def _focal_loss_kernel(x_ref, t_ref, out_ref, *, gamma, gamma_int,
                       binary_targets, tile_r, chunk_r, steps, num_blocks,
                       rows, needs_tail_mask):
    s = pl.program_id(1)

    @pl.when(s == 0)
    def _():
        out_ref[...] = jnp.zeros_like(out_ref)

    def accumulate_chunk(c, mask):
        sl = pl.ds(c * chunk_r, chunk_r)
        x = x_ref[sl, :].astype(jnp.float32)
        t = t_ref[sl, :].astype(jnp.float32)
        loss = _focal_elementwise(x, t, gamma, gamma_int, binary_targets)
        if mask is not None:
            loss = jnp.where(mask, loss, 0.0)
        # Fold the (chunk_r, 128) chunk into the persistent lane-dense
        # (ACC_ROWS, 128) output block with pure VPU adds (no XLU on the
        # loop-carried chain); the final cross-lane reduce happens in the
        # wrapper on a tiny (parts*ACC_ROWS, 128) array.
        out_ref[...] += loss.reshape(-1, ACC_ROWS, LANES).sum(axis=0)

    n_chunks = tile_r // chunk_r

    if needs_tail_mask:
        p = pl.program_id(0)
        block_idx = p * steps + s                       # logical block id
        last_valid = rows - (num_blocks - 1) * tile_r   # static python int
        # Rows valid in this block: full for interior blocks, the static
        # remainder for the final real block, 0 for the (index-clamped) dummy
        # block past the end.  Row-granularity masking avoids any i32
        # flat-index overflow; the sub-128-element remainder never reaches
        # the kernel (handled in the wrapper).
        valid_rows = jnp.where(
            block_idx < num_blocks - 1, jnp.int32(tile_r),
            jnp.where(block_idx == num_blocks - 1, jnp.int32(last_valid),
                      jnp.int32(0)))
        row_ids = lax.broadcasted_iota(jnp.int32, (chunk_r, LANES), 0)
        for c in range(n_chunks):
            accumulate_chunk(c, row_ids < (valid_rows - c * chunk_r))
    else:
        for c in range(n_chunks):
            accumulate_chunk(c, None)


def focal_loss_v2(inp, target, gamma=2.0, *, binary_targets=False,
                  max_tile_r=MAX_TILE_R):
    """Forward pass of FocalLoss_v2.

    binary_targets=True enables the exact fast path for targets in {0, 1}
    (how the module is normally used); the default keeps the general
    soft-target semantics of the PyTorch module.
    """
    if inp.shape != target.shape:
        raise ValueError(
            "Target size ({}) must be the same as input size ({})".format(
                target.shape, inp.shape))

    channels = inp.shape[1]
    numel = inp.size
    denom = numel // channels     # .sum(dim=1).mean() divides by numel / C

    g = float(gamma)
    gamma_int = int(g) if (g.is_integer() and 0.0 <= g <= 16.0) else None

    x_flat = inp.reshape(-1)      # free: contiguous reshape
    t_flat = target.reshape(-1)

    # Ragged numel: compute the (< 128-element) remainder with plain JAX so
    # the kernel always sees a lane-aligned stream and we never pad/copy the
    # full tensors (review option (a)); lane-aligned shapes are zero-copy.
    aligned = (numel // LANES) * LANES
    if aligned != numel:
        x_tail = lax.slice(x_flat, (aligned,), (numel,)).astype(jnp.float32)
        t_tail = lax.slice(t_flat, (aligned,), (numel,)).astype(jnp.float32)
        tail_sum = jnp.sum(
            _focal_elementwise(x_tail, t_tail, g, gamma_int, binary_targets))
    else:
        tail_sum = jnp.float32(0.0)
    if aligned == 0:
        # Tiny input: entirely handled by the wrapper math.
        return tail_sum / jnp.float32(denom)
    if aligned != numel:
        x_flat = lax.slice(x_flat, (0,), (aligned,))
        t_flat = lax.slice(t_flat, (0,), (aligned,))

    rows = aligned // LANES
    x2 = x_flat.reshape(rows, LANES)
    t2 = t_flat.reshape(rows, LANES)

    # DMA tile: large (amortizes ~0.35 us/step pipeline overhead), compute is
    # chunked inside the tile so elementwise temporaries stay small in VMEM.
    tile_r = min(int(max_tile_r), pl.cdiv(rows, ACC_ROWS) * ACC_ROWS)
    tile_r = max(ACC_ROWS, (tile_r // ACC_ROWS) * ACC_ROWS)
    if tile_r > MAX_CHUNK_R:
        tile_r = (tile_r // MAX_CHUNK_R) * MAX_CHUNK_R
    chunk_r = min(tile_r, MAX_CHUNK_R)

    num_blocks = pl.cdiv(rows, tile_r)
    # Unconditional 2-way split whenever there are >= 2 blocks so v7x's two
    # TensorCores each get a stream (sequential & harmless on v5e/v6e).
    parts = 2 if num_blocks >= 2 else 1
    steps = pl.cdiv(num_blocks, parts)
    needs_tail_mask = (parts * steps * tile_r) != rows

    def in_index_map(p, s):
        # Clamp so a dummy past-the-end block re-reads the last real block;
        # its contribution is masked to zero inside the kernel.
        return (jnp.minimum(p * steps + s, num_blocks - 1), 0)

    in_spec = pl.BlockSpec((tile_r, LANES), in_index_map)

    kernel = functools.partial(
        _focal_loss_kernel, gamma=g, gamma_int=gamma_int,
        binary_targets=binary_targets, tile_r=tile_r, chunk_r=chunk_r,
        steps=steps, num_blocks=num_blocks, rows=rows,
        needs_tail_mask=needs_tail_mask)

    partials = pl.pallas_call(
        kernel,
        out_shape=jax.ShapeDtypeStruct((parts * ACC_ROWS, LANES), jnp.float32),
        grid_spec=pltpu.PrefetchScalarGridSpec(
            num_scalar_prefetch=0,
            grid=(parts, steps),
            in_specs=[in_spec, in_spec],
            out_specs=pl.BlockSpec((ACC_ROWS, LANES), lambda p, s: (p, 0)),
        ),
        compiler_params=pltpu.CompilerParams(
            dimension_semantics=("parallel", "arbitrary"),
            vmem_limit_bytes=40 * 1024 * 1024),
    )(x2, t2)

    return (jnp.sum(partials) + tail_sum) / jnp.float32(denom)


def _focal_loss_ref(inp, target, gamma=2.0):
    """Pure-JAX mirror of the PyTorch module (reference)."""
    x = inp.astype(jnp.float32)
    t = target.astype(jnp.float32)
    max_val = jnp.maximum(-x, 0.0)
    loss = x - x * t + max_val + jnp.log(
        jnp.exp(-max_val) + jnp.exp(-x - max_val))
    invprobs = jax.nn.log_sigmoid(-x * (t * 2.0 - 1.0))
    loss = jnp.exp(invprobs * gamma) * loss
    return loss.sum(axis=1).mean()


if __name__ == "__main__":
    key = jax.random.PRNGKey(0)
    ks = jax.random.split(key, 12)

    def check(out, ref, name):
        assert jnp.allclose(out, ref, rtol=2e-5, atol=2e-5), (name, out, ref)

    # 1) typical lane-aligned NCHW shape, exact soft-target path, gamma=2
    x = jax.random.normal(ks[0], (2, 4, 16, 16), dtype=jnp.float32)
    yb = jax.random.bernoulli(ks[1], 0.3, (2, 4, 16, 16)).astype(jnp.float32)
    out = jax.block_until_ready(focal_loss_v2(x, yb, gamma=2.0))
    check(out, _focal_loss_ref(x, yb, 2.0), "aligned")

    # 2) binary-target fast path (targets are exactly {0,1})
    out_b = jax.block_until_ready(
        focal_loss_v2(x, yb, gamma=2.0, binary_targets=True))
    check(out_b, _focal_loss_ref(x, yb, 2.0), "binary fast path")

    # 3) soft targets + non-integer gamma (exact fallback path)
    ysoft = jax.random.uniform(ks[2], (2, 4, 16, 16), dtype=jnp.float32)
    out_s = jax.block_until_ready(focal_loss_v2(x, ysoft, gamma=1.5))
    check(out_s, _focal_loss_ref(x, ysoft, 1.5), "soft targets gamma=1.5")

    # 4) ragged numel (numel % 128 != 0): wrapper tail + straddling block mask
    x2 = jax.random.normal(ks[3], (2, 3, 11, 16), dtype=jnp.float32)
    y2 = jax.random.bernoulli(ks[4], 0.5, (2, 3, 11, 16)).astype(jnp.float32)
    out2 = jax.block_until_ready(focal_loss_v2(x2, y2, gamma=2.0))
    check(out2, _focal_loss_ref(x2, y2, 2.0), "ragged")

    # 5) multi-block with an odd block count: unconditional 2-way split,
    #    clamped dummy block, partially-valid last block (small max_tile_r
    #    override exercises the same paths large inputs hit).
    x3 = jax.random.normal(ks[5], (2, 4, 30, 80), dtype=jnp.float32)
    y3 = jax.random.bernoulli(ks[6], 0.4, (2, 4, 30, 80)).astype(jnp.float32)
    out3 = jax.block_until_ready(
        focal_loss_v2(x3, y3, gamma=2.0, max_tile_r=32))
    check(out3, _focal_loss_ref(x3, y3, 2.0), "multi-block odd")

    # 6) ragged + multi-block (even block count, straddling last block)
    x4 = jax.random.normal(ks[7], (2, 3, 25, 89), dtype=jnp.float32)
    y4 = jax.random.bernoulli(ks[8], 0.6, (2, 3, 25, 89)).astype(jnp.float32)
    out4 = jax.block_until_ready(
        focal_loss_v2(x4, y4, gamma=2.0, max_tile_r=32))
    check(out4, _focal_loss_ref(x4, y4, 2.0), "ragged multi-block")

    # 7) bf16 inputs/targets stream through unconverted (in-kernel upcast)
    x5 = jax.random.normal(ks[9], (2, 4, 16, 16), dtype=jnp.bfloat16)
    y5 = jax.random.bernoulli(ks[10], 0.3, (2, 4, 16, 16)).astype(jnp.bfloat16)
    out5 = jax.block_until_ready(
        focal_loss_v2(x5, y5, gamma=2.0, binary_targets=True))
    check(out5, _focal_loss_ref(x5, y5, 2.0), "bf16 streaming")

    print("KERNEL_OK")
</pallas_src>

<mosaic_0001>
module attributes {stable_mosaic.version = 11 : i64} {
  func.func @_focal_loss_kernel(%arg0: i32, %arg1: i32, %arg2: memref<32x128xf32, #tpu.memory_space<vmem>>, %arg3: memref<32x128xf32, #tpu.memory_space<vmem>>, %arg4: memref<32x128xf32, #tpu.memory_space<vmem>>) attributes {dimension_semantics = [#tpu.dimension_semantics<parallel>, #tpu.dimension_semantics<arbitrary>], iteration_bounds = array<i64: 1, 1>, scalar_prefetch = 0 : i64, scratch_operands = 0 : i64, tpu.core_type = #tpu.core_type<tc>, window_params = [{transform_indices = @transform_0, window_bounds = array<i64: 32, 128>}, {transform_indices = @transform_1, window_bounds = array<i64: 32, 128>}, {transform_indices = @transform_2, window_bounds = array<i64: 32, 128>}]} {
    %c0_i32 = arith.constant 0 : i32
    %0 = arith.cmpi eq, %arg1, %c0_i32 : i32
    %1 = arith.extui %0 : i1 to i32
    %c0_i32_0 = arith.constant 0 : i32
    %2 = arith.cmpi ne, %1, %c0_i32_0 : i32
    scf.if %2 {
      %cst_22 = arith.constant 0.000000e+00 : f32
      %52 = vector.broadcast %cst_22 : f32 to vector<32x128xf32>
      %c0_23 = arith.constant 0 : index
      %c0_24 = arith.constant 0 : index
      %53 = vector.load %arg4[%c0_23, %c0_24] : memref<32x128xf32, #tpu.memory_space<vmem>>, vector<32x128xf32>
      tpu.vector_store %arg4[%c0_23, %c0_24], %52 {strides = array<i32>} : memref<32x128xf32, #tpu.memory_space<vmem>>, vector<32x128xf32>,
    } else {
    }
    %c1_i32 = arith.constant 1 : i32
    %3 = arith.muli %arg0, %c1_i32 : i32
    %4 = arith.addi %3, %arg1 : i32
    %c0_i32_1 = arith.constant 0 : i32
    %5 = arith.cmpi slt, %4, %c0_i32_1 : i32
    %c0_i32_2 = arith.constant 0 : i32
    %6 = arith.cmpi eq, %4, %c0_i32_2 : i32
    %c16_i32 = arith.constant 16 : i32
    %c0_i32_3 = arith.constant 0 : i32
    %7 = arith.select %6, %c16_i32, %c0_i32_3 : i32
    %c32_i32 = arith.constant 32 : i32
    %8 = arith.select %5, %c32_i32, %7 : i32
    %9 = tpu.iota {dimensions = array<i32: 0>} : vector<32x128xi32>
    %c0_i32_4 = arith.constant 0 : i32
    %10 = arith.subi %8, %c0_i32_4 : i32
    %11 = vector.broadcast %10 : i32 to vector<32x128xi32>
    %12 = arith.cmpi slt, %9, %11 : vector<32x128xi32>
    %c0 = arith.constant 0 : index
    %c0_5 = arith.constant 0 : index
    %13 = vector.load %arg2[%c0, %c0_5] : memref<32x128xf32, #tpu.memory_space<vmem>>, vector<32x128xf32>
    %c0_6 = arith.constant 0 : index
    %c0_7 = arith.constant 0 : index
    %14 = vector.load %arg3[%c0_6, %c0_7] : memref<32x128xf32, #tpu.memory_space<vmem>>, vector<32x128xf32>
    %15 = math.absf %13 : vector<32x128xf32>
    %cst = arith.constant 0.000000e+00 : f32
    %16 = vector.broadcast %cst : f32 to vector<32x128xf32>
    %17 = arith.subf %16, %15 : vector<32x128xf32>
    %18 = math.exp %17 : vector<32x128xf32>
    %cst_8 = arith.constant 0.000000e+00 : f32
    %19 = vector.broadcast %cst_8 : f32 to vector<32x128xf32>
    %20 = arith.maximumf %13, %19 : vector<32x128xf32>
    %21 = arith.mulf %13, %14 : vector<32x128xf32>
    %22 = arith.subf %20, %21 : vector<32x128xf32>
    %23 = math.log1p %18 : vector<32x128xf32>
    %24 = arith.addf %22, %23 : vector<32x128xf32>
    %cst_9 = arith.constant 0.000000e+00 : f32
    %25 = vector.broadcast %cst_9 : f32 to vector<32x128xf32>
    %26 = arith.subf %25, %13 : vector<32x128xf32>
    %cst_10 = arith.constant 2.000000e+00 : f32
    %27 = vector.broadcast %cst_10 : f32 to vector<32x128xf32>
    %28 = arith.mulf %14, %27 : vector<32x128xf32>
    %cst_11 = arith.constant 1.000000e+00 : f32
    %29 = vector.broadcast %cst_11 : f32 to vector<32x128xf32>
    %30 = arith.subf %28, %29 : vector<32x128xf32>
    %31 = arith.mulf %26, %30 : vector<32x128xf32>
    %32 = math.absf %31 : vector<32x128xf32>
    %cst_12 = arith.constant 0.000000e+00 : f32
    %33 = vector.broadcast %cst_12 : f32 to vector<32x128xf32>
    %34 = arith.subf %33, %32 : vector<32x128xf32>
    %35 = math.exp %34 : vector<32x128xf32>
    %cst_13 = arith.constant 0.000000e+00 : f32
    %36 = vector.broadcast %cst_13 : f32 to vector<32x128xf32>
    %37 = arith.cmpf oge, %31, %36 : vector<32x128xf32>
    %cst_14 = arith.constant 1.000000e+00 : f32
    %38 = vector.broadcast %cst_14 : f32 to vector<32x128xf32>
    %39 = arith.select %37, %38, %35 : vector<32x128xi1>, vector<32x128xf32>
    %cst_15 = arith.constant 1.000000e+00 : f32
    %40 = vector.broadcast %cst_15 : f32 to vector<32x128xf32>
    %41 = arith.addf %40, %35 : vector<32x128xf32>
    %42 = arith.divf %39, %41 : vector<32x128xf32>
    %43 = arith.mulf %42, %42 : vector<32x128xf32>
    %44 = arith.mulf %43, %24 : vector<32x128xf32>
    %cst_16 = arith.constant 0.000000e+00 : f32
    %45 = vector.broadcast %cst_16 : f32 to vector<32x128xf32>
    %46 = arith.select %12, %44, %45 : vector<32x128xi1>, vector<32x128xf32>
    %c0_17 = arith.constant 0 : index
    %c0_18 = arith.constant 0 : index
    %47 = vector.load %arg4[%c0_17, %c0_18] : memref<32x128xf32, #tpu.memory_space<vmem>>, vector<32x128xf32>
    %48 = vector.shape_cast %46 : vector<32x128xf32> to vector<1x32x128xf32>
    %cst_19 = arith.constant dense<0.000000e+00> : vector<32x128xf32>
    %49 = vector.multi_reduction <add>, %48, %cst_19 [0] : vector<1x32x128xf32> to vector<32x128xf32>
    %50 = arith.addf %47, %49 : vector<32x128xf32>
    %c0_20 = arith.constant 0 : index
    %c0_21 = arith.constant 0 : index
    %51 = vector.load %arg4[%c0_20, %c0_21] : memref<32x128xf32, #tpu.memory_space<vmem>>, vector<32x128xf32>
    tpu.vector_store %arg4[%c0_20, %c0_21], %50 {strides = array<i32>} : memref<32x128xf32, #tpu.memory_space<vmem>>, vector<32x128xf32>,
    return
  }
  func.func @transform_0(%arg0: i32, %arg1: i32) -> (i32, i32) {
    %c1_i32 = arith.constant 1 : i32
    %0 = arith.muli %arg0, %c1_i32 : i32
    %1 = arith.addi %0, %arg1 : i32
    %c0_i32 = arith.constant 0 : i32
    %2 = arith.minsi %1, %c0_i32 : i32
    %c0_i32_0 = arith.constant 0 : i32
    %c0_i32_1 = arith.constant 0 : i32
    return %2, %c0_i32_0 : i32, i32
  }
  func.func @transform_1(%arg0: i32, %arg1: i32) -> (i32, i32) {
    %c1_i32 = arith.constant 1 : i32
    %0 = arith.muli %arg0, %c1_i32 : i32
    %1 = arith.addi %0, %arg1 : i32
    %c0_i32 = arith.constant 0 : i32
    %2 = arith.minsi %1, %c0_i32 : i32
    %c0_i32_0 = arith.constant 0 : i32
    %c0_i32_1 = arith.constant 0 : i32
    return %2, %c0_i32_0 : i32, i32
  }
  func.func @transform_2(%arg0: i32, %arg1: i32) -> (i32, i32) {
    %c0_i32 = arith.constant 0 : i32
    %c0_i32_0 = arith.constant 0 : i32
    return %arg0, %c0_i32 : i32, i32
  }
}

</mosaic_0001>

<llo_original>
// kernel: tpu_custom_call.1
$region0: #{tpu_custom_call.1}
  #allocation0 [shape = 'u32[]', space=smem, size = 0x4, offset = 0x4, fixed_abs, tag = 'smem constant byte address 0x4 - core index']
  #allocation1 [shape = 'u32[144,128]{1,0:T(1,128)}', space=vmem, size = 0x12000, scoped, tag = 'internal scratch']
  %s0 = inlined_call_operand.hbm [shape: f32[16,128], index: 0, kind: input, shape index: {}]
  %s1 = inlined_call_operand.hbm [shape: f32[16,128], index: 1, kind: input, shape index: {}]
  %s2 = inlined_call_operand.hbm [shape: f32[32,128], index: 2, kind: output, shape index: {}]
  %s3 = sld [smem:[#allocation0]]
  $region30: #{tpu_custom_call.1} parent=0
    _
  %s5 = ssub.s32 1, %s3
  %s6 = scalar_select 0, %s5, %s3
  $region1: #{tpu_custom_call.1} parent=0
    #allocation2 [shape = 'u8[16384]{0}', space=vmem, size = 0x4000, scoped, tag = 'input window, operand 0, single buffered']
    #allocation3 [shape = 's32[1]{0}', space=sflag, size = 0x4, scoped, tag = 'scoped memory for tpu_custom_call.1']
    #allocation4 [shape = 's32[1]{0}', space=sflag, size = 0x4, scoped, tag = 'scoped memory for tpu_custom_call.1']
    #allocation5 [shape = 'u8[16384]{0}', space=vmem, size = 0x4000, scoped, tag = 'input window, operand 1, single buffered']
    #allocation6 [shape = 's32[1]{0}', space=sflag, size = 0x4, scoped, tag = 'scoped memory for tpu_custom_call.1']
    #allocation7 [shape = 'u8[16384]{0}', space=vmem, size = 0x4000, scoped, tag = 'output window, operand 0, single buffered']
    %7 = vsyncpa [#allocation3], 0
    %8 = vsyncpa [#allocation6], 0
    %9 = vsyncpa [#allocation4], 0
    // Predicated region
    $region2: #{tpu_custom_call.1} parent=1 // pred_check
      _
    $region3: #{tpu_custom_call.1} parent=1 // pred_check_branch
      %11 = sbr.rel (0) target = $region5
    $region4: #{tpu_custom_call.1} parent=1 // pred_region
      %s12 = sadd.s32 0, 0
      %p13 = scmp.lt.s32.totalorder %s12, 0
      %s14 = scalar_select %p13, %s12, 0
      %s15 = smul.u32 4, %s14
      %s16 = ssub.s32 2, %s15
      %s17 = smul.u32 128, %s16
      %s19 = ssub.s32 512, %s17
      %20 = vsyncadd [#allocation3], %s19
      %p21 = scmp.ne.s32.totalorder 0, %s17
      %s22 = smul.addr %s15, 128
      %s23 = scalar_lea.hbm %s0, %s22
      %s24 = smul.u32 8, %s16
      %s25 = sshll.u32 [#allocation2], 4
      %s26 = int_to_ptr.vmem [resolvable:$true] %s25
      %s27 = sshll.u32 %s24, 4
      %31 = dma.hbm_to_vmem [thread:$0]  (%p21), %s23, %s27, %s26, [#allocation3], 128, 128, 8
    $region5: #{tpu_custom_call.1} parent=1 // pred_fallthru
      _
    // Predicated region
    $region6: #{tpu_custom_call.1} parent=1 // pred_check
      _
    $region7: #{tpu_custom_call.1} parent=1 // pred_check_branch
      %33 = sbr.rel (0) target = $region9
    $region8: #{tpu_custom_call.1} parent=1 // pred_region
      %s34 = sadd.s32 0, 0
      %p35 = scmp.lt.s32.totalorder %s34, 0
      %s36 = scalar_select %p35, %s34, 0
      %s37 = smul.u32 4, %s36
      %s38 = ssub.s32 2, %s37
      %s39 = smul.u32 128, %s38
      %s41 = ssub.s32 512, %s39
      %42 = vsyncadd [#allocation6], %s41
      %p43 = scmp.ne.s32.totalorder 0, %s39
      %s44 = smul.addr %s37, 128
      %s45 = scalar_lea.hbm %s1, %s44
      %s46 = smul.u32 8, %s38
      %s47 = sshll.u32 [#allocation5], 4
      %s48 = int_to_ptr.vmem [resolvable:$true] %s47
      %s49 = sshll.u32 %s46, 4
      %53 = dma.hbm_to_vmem [thread:$0]  (%p43), %s45, %s49, %s48, [#allocation6], 128, 128, 8
    $region9: #{tpu_custom_call.1} parent=1 // pred_fallthru
      _
    // Predicated region
    $region10: #{tpu_custom_call.1} parent=1 // pred_check
      _
    $region11: #{tpu_custom_call.1} parent=1 // pred_check_branch
      %55 = sbr.rel (0) target = $region13
    $region12: #{tpu_custom_call.1} parent=1 // pred_region
      %56 = dma.done [#allocation3], 512
    $region13: #{tpu_custom_call.1} parent=1 // pred_fallthru
      _
    // Predicated region
    $region14: #{tpu_custom_call.1} parent=1 // pred_check
      _
    $region15: #{tpu_custom_call.1} parent=1 // pred_check_branch
      %58 = sbr.rel (0) target = $region17
    $region16: #{tpu_custom_call.1} parent=1 // pred_region
      %59 = dma.done [#allocation6], 512
    $region17: #{tpu_custom_call.1} parent=1 // pred_fallthru
      _
    %s60 = sadd.s32 0, 0
    %p61 = scmp.lt.s32.totalorder %s60, 0
    %s62 = scalar_select %p61, %s60, 0
    %s63 = smul.u32 4, %s62
    %s64 = ssub.s32 2, %s63
    %s65 = smul.u32 128, %s64
    %s66 = sadd.s32 0, 0
    %p67 = scmp.lt.s32.totalorder %s66, 0
    %s68 = scalar_select %p67, %s66, 0
    %s69 = smul.u32 4, %s68
    %s70 = ssub.s32 2, %s69
    %s71 = smul.u32 128, %s70
    %p72 = scmp.eq.s32.totalorder 0, 0
    // Predicated region
    $region18: #{tpu_custom_call.1} parent=1 // pred_check
      %p73 = pneg %p72
    $region19: #{tpu_custom_call.1} parent=1 // pred_check_branch
      %75 = sbr.rel (%p73) target = $region21
    $region20: #{tpu_custom_call.1} parent=1 // pred_region
      %76 = vst [vmem:[#allocation7] sm:$0xff] 0.0
      %77 = vst [vmem:[#allocation7 + $0x8] sm:$0xff] 0.0
      %78 = vst [vmem:[#allocation7 + $0x10] sm:$0xff] 0.0
      %79 = vst [vmem:[#allocation7 + $0x18] sm:$0xff] 0.0
    $region21: #{tpu_custom_call.1} parent=1 // pred_fallthru
      _
    %s80 = sadd.s32 0, 0
    %p81 = scmp.lt.s32.totalorder %s80, 0
    %p82 = scmp.eq.s32.totalorder %s80, 0
    %s83 = scalar_select %p82, 16, 0
    %s84 = scalar_select %p81, 32, %s83
    %v85 = vlaneseq
    %v86 = vshrl.u32 %v85, 7
    %v87 = vadd.s32 %v86, 8
    %v88 = vadd.s32 %v86, 16
    %v89 = vadd.s32 %v86, 24
    %v90 = vstv %s84
    %vm91 = vcmp.lt.s32.totalorder %v86, %v90
    %vm92 = vcmp.lt.s32.totalorder %v87, %v90
    %vm93 = vcmp.lt.s32.totalorder %v88, %v90
    %vm94 = vcmp.lt.s32.totalorder %v89, %v90
    %v95 = vld [vmem:[#allocation2] sm:$0xff]
    %v96 = vld [vmem:[#allocation2 + $0x8] sm:$0xff]
    %v97 = vld [vmem:[#allocation2 + $0x10] sm:$0xff]
    %v98 = vld [vmem:[#allocation2 + $0x18] sm:$0xff]
    %v99 = vld [vmem:[#allocation5] sm:$0xff]
    %v100 = vld [vmem:[#allocation5 + $0x8] sm:$0xff]
    %v101 = vld [vmem:[#allocation5 + $0x10] sm:$0xff]
    %v102 = vld [vmem:[#allocation5 + $0x18] sm:$0xff]
    %v103 = vand.u32 2147483647, %v95
    %v104 = vand.u32 2147483647, %v96
    %v105 = vand.u32 2147483647, %v97
    %v106 = vand.u32 2147483647, %v98
    %v107 = vsub.f32 0.0, %v103
    %v108 = vsub.f32 0.0, %v104
    %v109 = vsub.f32 0.0, %v105
    %v110 = vsub.f32 0.0, %v106
    %v111 = vmul.f32 %v107, 1.442695
    %v112 = vpow.pop %v111
    %v113 = vmul.f32 %v108, 1.442695
    %v114 = vpow.pop %v113
    %v115 = vmul.f32 %v109, 1.442695
    %v116 = vpow.pop %v115
    %v117 = vmul.f32 %v110, 1.442695
    %v118 = vpow.pop %v117
    %v119 = vmax.f32 %v95, 0.0
    %v120 = vmax.f32 %v96, 0.0
    %v121 = vmax.f32 %v97, 0.0
    %v122 = vmax.f32 %v98, 0.0
    %v123 = vmul.f32 %v95, %v99
    %v124 = vmul.f32 %v96, %v100
    %v125 = vmul.f32 %v97, %v101
    %v126 = vmul.f32 %v98, %v102
    %v127 = vsub.f32 %v119, %v123
    %v128 = vsub.f32 %v120, %v124
    %v129 = vsub.f32 %v121, %v125
    %v130 = vsub.f32 %v122, %v126
    %v131 = vadd.f32 %v112, 1.0
    %v132 = vlog2.pop %v131
    %v133 = vmul.f32 %v132, 0.6931472
    %v134 = vmul.f32 -0.5, %v112
    %v135 = vadd.f32 %v134, 1.0
    %v136 = vmul.f32 %v135, %v112
    %v137 = vand.u32 2147483647, %v112
    %vm138 = vcmp.lt.f32.partialorder %v137, 0.0004427343
    %v139 = vsel %vm138, %v136, %v133
    %v140 = vadd.f32 %v114, 1.0
    %v141 = vlog2.pop %v140
    %v142 = vmul.f32 %v141, 0.6931472
    %v143 = vmul.f32 -0.5, %v114
    %v144 = vadd.f32 %v143, 1.0
    %v145 = vmul.f32 %v144, %v114
    %v146 = vand.u32 2147483647, %v114
    %vm147 = vcmp.lt.f32.partialorder %v146, 0.0004427343
    %v148 = vsel %vm147, %v145, %v142
    %v149 = vadd.f32 %v116, 1.0
    %v150 = vlog2.pop %v149
    %v151 = vmul.f32 %v150, 0.6931472
    %v152 = vmul.f32 -0.5, %v116
    %v153 = vadd.f32 %v152, 1.0
    %v154 = vmul.f32 %v153, %v116
    %v155 = vand.u32 2147483647, %v116
    %vm156 = vcmp.lt.f32.partialorder %v155, 0.0004427343
    %v157 = vsel %vm156, %v154, %v151
    %v158 = vadd.f32 %v118, 1.0
    %v159 = vlog2.pop %v158
    %v160 = vmul.f32 %v159, 0.6931472
    %v161 = vmul.f32 -0.5, %v118
    %v162 = vadd.f32 %v161, 1.0
    %v163 = vmul.f32 %v162, %v118
    %v164 = vand.u32 2147483647, %v118
    %vm165 = vcmp.lt.f32.partialorder %v164, 0.0004427343
    %v166 = vsel %vm165, %v163, %v160
    %v167 = vadd.f32 %v127, %v139
    %v168 = vadd.f32 %v128, %v148
    %v169 = vadd.f32 %v129, %v157
    %v170 = vadd.f32 %v130, %v166
    %v171 = vsub.f32 0.0, %v95
    %v172 = vsub.f32 0.0, %v96
    %v173 = vsub.f32 0.0, %v97
    %v174 = vsub.f32 0.0, %v98
    %v175 = vmul.f32 %v99, 2.0
    %v176 = vmul.f32 %v100, 2.0
    %v177 = vmul.f32 %v101, 2.0
    %v178 = vmul.f32 %v102, 2.0
    %v179 = vsub.f32 %v175, 1.0
    %v180 = vsub.f32 %v176, 1.0
    %v181 = vsub.f32 %v177, 1.0
    %v182 = vsub.f32 %v178, 1.0
    %v183 = vmul.f32 %v171, %v179
    %v184 = vmul.f32 %v172, %v180
    %v185 = vmul.f32 %v173, %v181
    %v186 = vmul.f32 %v174, %v182
    %v187 = vand.u32 2147483647, %v183
    %v188 = vand.u32 2147483647, %v184
    %v189 = vand.u32 2147483647, %v185
    %v190 = vand.u32 2147483647, %v186
    %v191 = vsub.f32 0.0, %v187
    %v192 = vsub.f32 0.0, %v188
    %v193 = vsub.f32 0.0, %v189
    %v194 = vsub.f32 0.0, %v190
    %v195 = vmul.f32 %v191, 1.442695
    %v196 = vpow.pop %v195
    %v197 = vmul.f32 %v192, 1.442695
    %v198 = vpow.pop %v197
    %v199 = vmul.f32 %v193, 1.442695
    %v200 = vpow.pop %v199
    %v201 = vmul.f32 %v194, 1.442695
    %v202 = vpow.pop %v201
    %vm203 = vcmp.ge.f32.partialorder %v183, 0.0
    %vm204 = vcmp.ge.f32.partialorder %v184, 0.0
    %vm205 = vcmp.ge.f32.partialorder %v185, 0.0
    %vm206 = vcmp.ge.f32.partialorder %v186, 0.0
    %v207 = vsel %vm203, 1.0, %v196
    %v208 = vsel %vm204, 1.0, %v198
    %v209 = vsel %vm205, 1.0, %v200
    %v210 = vsel %vm206, 1.0, %v202
    %v211 = vadd.f32 %v196, 1.0
    %v212 = vadd.f32 %v198, 1.0
    %v213 = vadd.f32 %v200, 1.0
    %v214 = vadd.f32 %v202, 1.0
    %v215 = vrcp.pop %v211
    %v216 = vmul.f32 %v207, %v215
    %v217 = vrcp.pop %v212
    %v218 = vmul.f32 %v208, %v217
    %v219 = vrcp.pop %v213
    %v220 = vmul.f32 %v209, %v219
    %v221 = vrcp.pop %v214
    %v222 = vmul.f32 %v210, %v221
    %v223 = vmul.f32 %v216, %v216
    %v224 = vmul.f32 %v218, %v218
    %v225 = vmul.f32 %v220, %v220
    %v226 = vmul.f32 %v222, %v222
    %v227 = vmul.f32 %v223, %v167
    %v228 = vmul.f32 %v224, %v168
    %v229 = vmul.f32 %v225, %v169
    %v230 = vmul.f32 %v226, %v170
    %v231 = vsel %vm91, %v227, 0.0
    %v232 = vsel %vm92, %v228, 0.0
    %v233 = vsel %vm93, %v229, 0.0
    %v234 = vsel %vm94, %v230, 0.0
    %v235 = vld [vmem:[#allocation7] sm:$0xff]
    %v236 = vld [vmem:[#allocation7 + $0x8] sm:$0xff]
    %v237 = vld [vmem:[#allocation7 + $0x10] sm:$0xff]
    %v238 = vld [vmem:[#allocation7 + $0x18] sm:$0xff]
    %v239 = vadd.f32 %v231, 0.0
    %v240 = vadd.f32 %v232, 0.0
    %v241 = vadd.f32 %v233, 0.0
    %v242 = vadd.f32 %v234, 0.0
    %v243 = vadd.f32 %v235, %v239
    %v244 = vadd.f32 %v236, %v240
    %v245 = vadd.f32 %v237, %v241
    %v246 = vadd.f32 %v238, %v242
    %247 = vst [vmem:[#allocation7] sm:$0xff] %v243
    %248 = vst [vmem:[#allocation7 + $0x8] sm:$0xff] %v244
    %249 = vst [vmem:[#allocation7 + $0x10] sm:$0xff] %v245
    %250 = vst [vmem:[#allocation7 + $0x18] sm:$0xff] %v246
    // Predicated region
    $region22: #{tpu_custom_call.1} parent=1 // pred_check
      _
    $region23: #{tpu_custom_call.1} parent=1 // pred_check_branch
      %252 = sbr.rel (0) target = $region25
    $region24: #{tpu_custom_call.1} parent=1 // pred_region
      %s254 = ssub.s32 512, 512
      %255 = vsyncadd [#allocation4], %s254
      %s256 = sshll.u32 [#allocation7], 4
      %s257 = int_to_ptr.vmem [resolvable:$true] %s256
      %262 = dma.vmem_to_hbm [thread:$0]  %s257, 512, %s2, [#allocation4], 128, 128, 8
    $region25: #{tpu_custom_call.1} parent=1 // pred_fallthru
      _
    // Predicated region
    $region26: #{tpu_custom_call.1} parent=1 // pred_check
      _
    $region27: #{tpu_custom_call.1} parent=1 // pred_check_branch
      %264 = sbr.rel (0) target = $region29
    $region28: #{tpu_custom_call.1} parent=1 // pred_region
      %265 = dma.done [#allocation4], 512
    $region29: #{tpu_custom_call.1} parent=1 // pred_fallthru
      _
    %266 = vsyncpa [#allocation3], 1
    %267 = vsyncpa [#allocation6], 1
    %268 = vsyncpa [#allocation4], 1

</llo_original>
